<compile_context>
chip_gen: v7x
topology: tpu7x:2x2x1
jax: 0.10.0
libtpu: 0.0.40
codegen_flags: <defaults>
</compile_context>

<pallas_src>
import jax
import jax.numpy as jnp
from jax.experimental import pallas as pl
from jax.experimental.pallas import tpu as pltpu


SUBLANE = 8   # f32 sublane multiple for the batch tile


def _round_up(x, m):
    return ((x + m - 1) // m) * m


# --------------------------------------------------------------------------
# Pallas kernel: fused 3-layer MLP forward pass for one batch tile
# --------------------------------------------------------------------------
def policy_mlp_kernel(x_ref,
                      w0_ref, b0_ref,
                      w1_ref, b1_ref,
                      w2_ref, b2_ref,
                      out_ref):
    # MXU operands are bf16 (weights arrive pre-cast); f32 accumulation.
    x = x_ref[...].astype(jnp.bfloat16)                        # [TB, state_dim]

    h0 = jnp.dot(x, w0_ref[...], preferred_element_type=jnp.float32)
    h0 = jnp.maximum(h0 + b0_ref[...], 0.0)                    # [TB, h0] f32

    h1 = jnp.dot(h0.astype(jnp.bfloat16), w1_ref[...],
                 preferred_element_type=jnp.float32)
    h1 = jnp.maximum(h1 + b1_ref[...], 0.0)                    # [TB, h1] f32

    logits = jnp.dot(h1.astype(jnp.bfloat16), w2_ref[...],
                     preferred_element_type=jnp.float32)
    out_ref[...] = (logits + b2_ref[...]).astype(out_ref.dtype)  # [TB, A]


# --------------------------------------------------------------------------
# Wrapper: batch tiling, weight residency, unpadded lane-thin output
# --------------------------------------------------------------------------
def policy_forward(states, params, *, tile_b=4096, min_pallas_batch=0):
    """PolicyModel.forward: states [B, state_dim] -> action logits [B, action_dim]."""
    (w0, b0), (w1, b1), (w2, b2) = params
    B, state_dim = states.shape
    h0_dim, h1_dim = w0.shape[1], w1.shape[1]
    action_dim = w2.shape[1]

    # Tiny-batch bypass: a fused XLA path beats kernel-launch + pipeline setup.
    if B < min_pallas_batch:
        x = jnp.maximum(jnp.dot(states.astype(jnp.bfloat16), w0.astype(jnp.bfloat16),
                                preferred_element_type=jnp.float32) + b0, 0.0)
        x = jnp.maximum(jnp.dot(x.astype(jnp.bfloat16), w1.astype(jnp.bfloat16),
                                preferred_element_type=jnp.float32) + b1, 0.0)
        return jnp.dot(x.astype(jnp.bfloat16), w2.astype(jnp.bfloat16),
                       preferred_element_type=jnp.float32) + b2

    # Weights are tiny and VMEM-resident across the whole grid: cast once.
    w0b = w0.astype(jnp.bfloat16)
    w1b = w1.astype(jnp.bfloat16)
    w2b = w2.astype(jnp.bfloat16)
    b0r = b0.reshape(1, -1).astype(jnp.float32)
    b1r = b1.reshape(1, -1).astype(jnp.float32)
    b2r = b2.reshape(1, -1).astype(jnp.float32)

    # Batch tile: big (amortizes ~0.35 us per-step overhead), sublane-aligned,
    # never larger than the (rounded-up) batch.
    tb = min(_round_up(tile_b, SUBLANE), _round_up(B, SUBLANE))
    # v7x has 2 TensorCores: make sure there are >=2 "parallel" grid steps
    # whenever there is enough work to split.
    if pl.cdiv(B, tb) < 2 and B > 2 * SUBLANE:
        tb = _round_up(pl.cdiv(B, 2), SUBLANE)
    grid = pl.cdiv(B, tb)   # ragged last block handled by Pallas (no jnp.pad)

    resident = lambda a: pl.BlockSpec(a.shape, lambda i, _n=a.ndim: (0,) * _n)

    flops = 2 * B * (state_dim * h0_dim + h0_dim * h1_dim + h1_dim * action_dim)
    bytes_accessed = (B * (states.dtype.itemsize * state_dim + 4 * action_dim)
                      + 2 * (state_dim * h0_dim + h0_dim * h1_dim + h1_dim * action_dim)
                      + 4 * (h0_dim + h1_dim + action_dim))

    out = pl.pallas_call(
        policy_mlp_kernel,
        out_shape=jax.ShapeDtypeStruct((B, action_dim), jnp.float32),
        grid_spec=pl.GridSpec(
            grid=(grid,),
            in_specs=[pl.BlockSpec((tb, state_dim), lambda i: (i, 0)),
                      resident(w0b), resident(b0r),
                      resident(w1b), resident(b1r),
                      resident(w2b), resident(b2r)],
            out_specs=pl.BlockSpec((tb, action_dim), lambda i: (i, 0)),
        ),
        compiler_params=pltpu.CompilerParams(
            dimension_semantics=("parallel",)),
        cost_estimate=pl.CostEstimate(flops=flops, transcendentals=0,
                                      bytes_accessed=bytes_accessed),
    )(states, w0b, b0r, w1b, b1r, w2b, b2r)

    return out


# --------------------------------------------------------------------------
# Deterministic parameter init (mimics nn.Linear uniform(-1/sqrt(in), 1/sqrt(in)))
# --------------------------------------------------------------------------
def init_params(key, state_dim, hidden_dims, action_dim):
    dims = [state_dim] + list(hidden_dims) + [action_dim]
    params = []
    for i in range(len(dims) - 1):
        in_d, out_d = dims[i], dims[i + 1]
        key, kw, kb = jax.random.split(key, 3)
        bound = 1.0 / jnp.sqrt(in_d)
        # stored as [in_dim, out_dim]  (== PyTorch weight.T)
        w = jax.random.uniform(kw, (in_d, out_d), jnp.float32, -bound, bound)
        b = jax.random.uniform(kb, (out_d,), jnp.float32, -bound, bound)
        params.append((w, b))
    return params


def reference_forward(states, params, matmul_dtype=jnp.float32):
    """Pure-JAX reference; matmul_dtype=bfloat16 emulates the kernel's MXU path."""
    x = states
    n = len(params)
    for i, (w, b) in enumerate(params):
        x = jnp.dot(x.astype(matmul_dtype), w.astype(matmul_dtype),
                    preferred_element_type=jnp.float32) + b
        if i < n - 1:
            x = jnp.maximum(x, 0.0)
    return x


if __name__ == "__main__":
    # Small, config-consistent shapes
    state_dim = 32
    hidden_dims = [64, 64]
    action_dim = 8

    key = jax.random.PRNGKey(0)
    key, ks1, ks2 = jax.random.split(key, 3)
    params = init_params(key, state_dim, hidden_dims, action_dim)

    # Case 1: tiny batch (single grid step), force the Pallas path.
    states8 = jax.random.normal(ks1, (8, state_dim), jnp.float32)
    logits8 = jax.block_until_ready(policy_forward(states8, params,
                                                   min_pallas_batch=0))
    assert logits8.shape == (8, action_dim)

    # Case 2: batch not divisible by the tile -> ragged last block + 2 grid steps.
    states300 = jax.random.normal(ks2, (300, state_dim), jnp.float32)
    logits300 = jax.block_until_ready(policy_forward(states300, params,
                                                     min_pallas_batch=0))
    assert logits300.shape == (300, action_dim)

    # Correctness: tight vs bf16-emulated reference, loose vs f32 reference
    # (bf16 MXU operands inside the kernel).
    for states, logits in ((states8, logits8), (states300, logits300)):
        ref_bf16 = reference_forward(states, params, matmul_dtype=jnp.bfloat16)
        ref_f32 = reference_forward(states, params, matmul_dtype=jnp.float32)
        assert jnp.allclose(logits, ref_bf16, atol=1e-3, rtol=1e-3), \
            "mismatch vs bf16 reference"
        assert jnp.allclose(logits, ref_f32, atol=5e-2, rtol=5e-2), \
            "mismatch vs f32 reference"

    print("KERNEL_OK")
</pallas_src>

<mosaic_0001>
module attributes {stable_mosaic.version = 11 : i64} {
  func.func @policy_mlp_kernel(%arg0: i32, %arg1: memref<8x32xf32, #tpu.memory_space<vmem>>, %arg2: memref<32x64xbf16, #tpu.memory_space<vmem>>, %arg3: memref<1x64xf32, #tpu.memory_space<vmem>>, %arg4: memref<64x64xbf16, #tpu.memory_space<vmem>>, %arg5: memref<1x64xf32, #tpu.memory_space<vmem>>, %arg6: memref<64x8xbf16, #tpu.memory_space<vmem>>, %arg7: memref<1x8xf32, #tpu.memory_space<vmem>>, %arg8: memref<8x8xf32, #tpu.memory_space<vmem>>) attributes {dimension_semantics = [#tpu.dimension_semantics<parallel>], iteration_bounds = array<i64: 1>, scalar_prefetch = 0 : i64, scratch_operands = 0 : i64, tpu.core_type = #tpu.core_type<tc>, window_params = [{transform_indices = @transform_0, window_bounds = array<i64: 8, 32>}, {pipeline_mode = #tpu.pipeline_mode<synchronous>, transform_indices = @transform_1, window_bounds = array<i64: 32, 64>}, {pipeline_mode = #tpu.pipeline_mode<synchronous>, transform_indices = @transform_2, window_bounds = array<i64: 1, 64>}, {pipeline_mode = #tpu.pipeline_mode<synchronous>, transform_indices = @transform_3, window_bounds = array<i64: 64, 64>}, {pipeline_mode = #tpu.pipeline_mode<synchronous>, transform_indices = @transform_4, window_bounds = array<i64: 1, 64>}, {pipeline_mode = #tpu.pipeline_mode<synchronous>, transform_indices = @transform_5, window_bounds = array<i64: 64, 8>}, {pipeline_mode = #tpu.pipeline_mode<synchronous>, transform_indices = @transform_6, window_bounds = array<i64: 1, 8>}, {transform_indices = @transform_7, window_bounds = array<i64: 8, 8>}]} {
    %c0 = arith.constant 0 : index
    %c0_0 = arith.constant 0 : index
    %0 = vector.load %arg1[%c0, %c0_0] : memref<8x32xf32, #tpu.memory_space<vmem>>, vector<8x32xf32>
    %1 = arith.truncf %0 : vector<8x32xf32> to vector<8x32xbf16>
    %c0_1 = arith.constant 0 : index
    %c0_2 = arith.constant 0 : index
    %2 = vector.load %arg2[%c0_1, %c0_2] : memref<32x64xbf16, #tpu.memory_space<vmem>>, vector<32x64xbf16>
    %cst = arith.constant dense<0.000000e+00> : vector<8x64xf32>
    %3 = tpu.matmul %1, %2, %cst {dimension_numbers = #tpu.dot_dimension_numbers<[1], [0], [0], [1], [0, 0, 1, 1], [], []>} : vector<8x32xbf16>, vector<32x64xbf16>, vector<8x64xf32> -> vector<8x64xf32>
    %c0_3 = arith.constant 0 : index
    %c0_4 = arith.constant 0 : index
    %4 = vector.load %arg3[%c0_3, %c0_4] : memref<1x64xf32, #tpu.memory_space<vmem>>, vector<1x64xf32>
    %5 = vector.broadcast %4 : vector<1x64xf32> to vector<8x64xf32>
    %6 = arith.addf %3, %5 : vector<8x64xf32>
    %cst_5 = arith.constant 0.000000e+00 : f32
    %7 = vector.broadcast %cst_5 : f32 to vector<8x64xf32>
    %8 = arith.maximumf %6, %7 : vector<8x64xf32>
    %9 = arith.truncf %8 : vector<8x64xf32> to vector<8x64xbf16>
    %c0_6 = arith.constant 0 : index
    %c0_7 = arith.constant 0 : index
    %10 = vector.load %arg4[%c0_6, %c0_7] : memref<64x64xbf16, #tpu.memory_space<vmem>>, vector<64x64xbf16>
    %cst_8 = arith.constant dense<0.000000e+00> : vector<8x64xf32>
    %11 = tpu.matmul %9, %10, %cst_8 {dimension_numbers = #tpu.dot_dimension_numbers<[1], [0], [0], [1], [0, 0, 1, 1], [], []>} : vector<8x64xbf16>, vector<64x64xbf16>, vector<8x64xf32> -> vector<8x64xf32>
    %c0_9 = arith.constant 0 : index
    %c0_10 = arith.constant 0 : index
    %12 = vector.load %arg5[%c0_9, %c0_10] : memref<1x64xf32, #tpu.memory_space<vmem>>, vector<1x64xf32>
    %13 = vector.broadcast %12 : vector<1x64xf32> to vector<8x64xf32>
    %14 = arith.addf %11, %13 : vector<8x64xf32>
    %cst_11 = arith.constant 0.000000e+00 : f32
    %15 = vector.broadcast %cst_11 : f32 to vector<8x64xf32>
    %16 = arith.maximumf %14, %15 : vector<8x64xf32>
    %17 = arith.truncf %16 : vector<8x64xf32> to vector<8x64xbf16>
    %c0_12 = arith.constant 0 : index
    %c0_13 = arith.constant 0 : index
    %18 = vector.load %arg6[%c0_12, %c0_13] : memref<64x8xbf16, #tpu.memory_space<vmem>>, vector<64x8xbf16>
    %cst_14 = arith.constant dense<0.000000e+00> : vector<8x8xf32>
    %19 = tpu.matmul %17, %18, %cst_14 {dimension_numbers = #tpu.dot_dimension_numbers<[1], [0], [0], [1], [0, 0, 1, 1], [], []>} : vector<8x64xbf16>, vector<64x8xbf16>, vector<8x8xf32> -> vector<8x8xf32>
    %c0_15 = arith.constant 0 : index
    %c0_16 = arith.constant 0 : index
    %20 = vector.load %arg7[%c0_15, %c0_16] : memref<1x8xf32, #tpu.memory_space<vmem>>, vector<1x8xf32>
    %21 = vector.broadcast %20 : vector<1x8xf32> to vector<8x8xf32>
    %22 = arith.addf %19, %21 : vector<8x8xf32>
    %c0_17 = arith.constant 0 : index
    %c0_18 = arith.constant 0 : index
    %23 = vector.load %arg8[%c0_17, %c0_18] : memref<8x8xf32, #tpu.memory_space<vmem>>, vector<8x8xf32>
    tpu.vector_store %arg8[%c0_17, %c0_18], %22 {strides = array<i32>} : memref<8x8xf32, #tpu.memory_space<vmem>>, vector<8x8xf32>,
    return
  }
  func.func @transform_0(%arg0: i32) -> (i32, i32) {
    %c0_i32 = arith.constant 0 : i32
    %c0_i32_0 = arith.constant 0 : i32
    return %arg0, %c0_i32 : i32, i32
  }
  func.func @transform_1(%arg0: i32) -> (i32, i32) {
    %c0_i32 = arith.constant 0 : i32
    %c0_i32_0 = arith.constant 0 : i32
    %c0_i32_1 = arith.constant 0 : i32
    return %c0_i32, %c0_i32_0 : i32, i32
  }
  func.func @transform_2(%arg0: i32) -> (i32, i32) {
    %c0_i32 = arith.constant 0 : i32
    %c0_i32_0 = arith.constant 0 : i32
    %c0_i32_1 = arith.constant 0 : i32
    return %c0_i32, %c0_i32_0 : i32, i32
  }
  func.func @transform_3(%arg0: i32) -> (i32, i32) {
    %c0_i32 = arith.constant 0 : i32
    %c0_i32_0 = arith.constant 0 : i32
    %c0_i32_1 = arith.constant 0 : i32
    return %c0_i32, %c0_i32_0 : i32, i32
  }
  func.func @transform_4(%arg0: i32) -> (i32, i32) {
    %c0_i32 = arith.constant 0 : i32
    %c0_i32_0 = arith.constant 0 : i32
    %c0_i32_1 = arith.constant 0 : i32
    return %c0_i32, %c0_i32_0 : i32, i32
  }
  func.func @transform_5(%arg0: i32) -> (i32, i32) {
    %c0_i32 = arith.constant 0 : i32
    %c0_i32_0 = arith.constant 0 : i32
    %c0_i32_1 = arith.constant 0 : i32
    return %c0_i32, %c0_i32_0 : i32, i32
  }
  func.func @transform_6(%arg0: i32) -> (i32, i32) {
    %c0_i32 = arith.constant 0 : i32
    %c0_i32_0 = arith.constant 0 : i32
    %c0_i32_1 = arith.constant 0 : i32
    return %c0_i32, %c0_i32_0 : i32, i32
  }
  func.func @transform_7(%arg0: i32) -> (i32, i32) {
    %c0_i32 = arith.constant 0 : i32
    %c0_i32_0 = arith.constant 0 : i32
    return %arg0, %c0_i32 : i32, i32
  }
}

</mosaic_0001>

<llo_original>
// kernel: tpu_custom_call.1
$region0: #{tpu_custom_call.1}
  #allocation0 [shape = 'u32[]', space=smem, size = 0x4, offset = 0x4, fixed_abs, tag = 'smem constant byte address 0x4 - core index']
  #allocation1 [shape = 'u32[144,128]{1,0:T(1,128)}', space=vmem, size = 0x12000, scoped, tag = 'internal scratch']
  %s0 = inlined_call_operand.vmem [shape: f32[8,32], index: 0, kind: input, shape index: {}]
  %s1 = inlined_call_operand.hbm [shape: bf16[32,64], index: 1, kind: input, shape index: {}]
  %s2 = inlined_call_operand.vmem [shape: f32[1,64], index: 2, kind: input, shape index: {}]
  %s3 = inlined_call_operand.vmem [shape: bf16[64,64], index: 3, kind: input, shape index: {}]
  %s4 = inlined_call_operand.vmem [shape: f32[1,64], index: 4, kind: input, shape index: {}]
  %s5 = inlined_call_operand.vmem [shape: bf16[64,8], index: 5, kind: input, shape index: {}]
  %s6 = inlined_call_operand.vmem [shape: f32[1,8], index: 6, kind: input, shape index: {}]
  %s7 = inlined_call_operand.hbm [shape: f32[8,8], index: 7, kind: output, shape index: {}]
  %s8 = sld [smem:[#allocation0]]
  $region42: #{tpu_custom_call.1} parent=0
    _
  %s10 = ssub.s32 1, %s8
  %s11 = scalar_select 0, %s10, %s8
  $region1: #{tpu_custom_call.1} parent=0
    #allocation2 [shape = 'u8[8192]{0}', space=vmem, size = 0x2000, scoped, tag = 'input window, operand 1, single buffered']
    #allocation3 [shape = 's32[1]{0}', space=sflag, size = 0x4, scoped, tag = 'scoped memory for tpu_custom_call.1']
    #allocation4 [shape = 's32[1]{0}', space=sflag, size = 0x4, scoped, tag = 'scoped memory for tpu_custom_call.1']
    #allocation5 [shape = 'u8[4096]{0}', space=vmem, size = 0x1000, scoped, tag = 'output window, operand 0, single buffered']
    %12 = vsyncpa [#allocation3], 0
    %13 = vsyncpa [#allocation4], 0
    // Predicated region
    $region2: #{tpu_custom_call.1} parent=1 // pred_check
      _
    $region3: #{tpu_custom_call.1} parent=1 // pred_check_branch
      %15 = sbr.rel (0) target = $region5
    $region4: #{tpu_custom_call.1} parent=1 // pred_region
      _
    $region5: #{tpu_custom_call.1} parent=1 // pred_fallthru
      _
    // Predicated region
    $region6: #{tpu_custom_call.1} parent=1 // pred_check
      _
    $region7: #{tpu_custom_call.1} parent=1 // pred_check_branch
      %17 = sbr.rel (0) target = $region9
    $region8: #{tpu_custom_call.1} parent=1 // pred_region
      %s19 = ssub.s32 256, 256
      %20 = vsyncadd [#allocation3], %s19
      %s21 = sshll.u32 [#allocation2], 4
      %s22 = int_to_ptr.vmem [resolvable:$true] %s21
      %27 = dma.hbm_to_vmem [thread:$0]  %s1, 256, %s22, [#allocation3], 64, 64, 4
    $region9: #{tpu_custom_call.1} parent=1 // pred_fallthru
      _
    // Predicated region
    $region10: #{tpu_custom_call.1} parent=1 // pred_check
      _
    $region11: #{tpu_custom_call.1} parent=1 // pred_check_branch
      %29 = sbr.rel (0) target = $region13
    $region12: #{tpu_custom_call.1} parent=1 // pred_region
      _
    $region13: #{tpu_custom_call.1} parent=1 // pred_fallthru
      _
    // Predicated region
    $region14: #{tpu_custom_call.1} parent=1 // pred_check
      _
    $region15: #{tpu_custom_call.1} parent=1 // pred_check_branch
      %31 = sbr.rel (0) target = $region17
    $region16: #{tpu_custom_call.1} parent=1 // pred_region
      _
    $region17: #{tpu_custom_call.1} parent=1 // pred_fallthru
      _
    // Predicated region
    $region18: #{tpu_custom_call.1} parent=1 // pred_check
      _
    $region19: #{tpu_custom_call.1} parent=1 // pred_check_branch
      %33 = sbr.rel (0) target = $region21
    $region20: #{tpu_custom_call.1} parent=1 // pred_region
      _
    $region21: #{tpu_custom_call.1} parent=1 // pred_fallthru
      _
    // Predicated region
    $region22: #{tpu_custom_call.1} parent=1 // pred_check
      _
    $region23: #{tpu_custom_call.1} parent=1 // pred_check_branch
      %35 = sbr.rel (0) target = $region25
    $region24: #{tpu_custom_call.1} parent=1 // pred_region
      _
    $region25: #{tpu_custom_call.1} parent=1 // pred_fallthru
      _
    // Predicated region
    $region26: #{tpu_custom_call.1} parent=1 // pred_check
      _
    $region27: #{tpu_custom_call.1} parent=1 // pred_check_branch
      %37 = sbr.rel (0) target = $region29
    $region28: #{tpu_custom_call.1} parent=1 // pred_region
      _
    $region29: #{tpu_custom_call.1} parent=1 // pred_fallthru
      _
    // Predicated region
    $region30: #{tpu_custom_call.1} parent=1 // pred_check
      _
    $region31: #{tpu_custom_call.1} parent=1 // pred_check_branch
      %39 = sbr.rel (0) target = $region33
    $region32: #{tpu_custom_call.1} parent=1 // pred_region
      %40 = dma.done [#allocation3], 256
    $region33: #{tpu_custom_call.1} parent=1 // pred_fallthru
      _
    %v42 = vld [vmem:[%s0] sm:$0xff]
    %v43 = vpack.c.bf16 %v42, %v42
    %v44 = vld [vmem:[#allocation2] sm:$0xf]
    %v45 = vld [vmem:[#allocation2 + $0x4] sm:$0xf]
    %v46 = vld [vmem:[#allocation2 + $0x8] sm:$0xf]
    %v47 = vld [vmem:[#allocation2 + $0xc] sm:$0xf]
    %v48 = vld [vmem:[%s2] sm:$0x1]
    %v50 = vlaneseq
    %v51 = vshrl.u32 %v50, 7
    %v52 = vsub.s32 0, %v51
    %v53 = vrot.slane %v48, %v52
    %v59 = vunpack.c.l.b16 %v44
    %v60 = vunpack.c.l.b16 %v45
    %v61 = vunpack.c.l.b16 %v46
    %v62 = vunpack.c.l.b16 %v47
    %v63 = vpack.c.b16 %v60, %v59
    %v64 = vpack.c.b16 %v62, %v61
    %vm67 = vcmask 261120
    %v69 = vsel %vm67, %v43, 0
    %71 = vmatprep.subr.bf16.mxu0 0
    %72 = vmatpush1.bf16.msra.mxu0 %v63
    %73 = vmatprep.subr.bf16.mxu0 0
    %74 = vmatpush1.bf16.msra.mxu0 %v64
    %75 = vmatprep.subr.bf16.mxu0 0
    %76 = vmatpush1.bf16.msra.mxu0 0
    %77 = vmatprep.subr.bf16.mxu0 0
    %78 = vmatpush1.bf16.msra.mxu0 0
    %79 = vmatprep.subr.bf16.mxu0 0
    %80 = vmatpush1.bf16.msra.mxu0 0
    %81 = vmatprep.subr.bf16.mxu0 0
    %82 = vmatpush1.bf16.msra.mxu0 0
    %83 = vmatprep.subr.bf16.mxu0 0
    %84 = vmatpush1.bf16.msra.mxu0 0
    %85 = vmatprep.subr.bf16.mxu0 0
    %86 = vmatpush1.bf16.msra.mxu0 0
    %87 = vmatprep.subr.bf16.mxu0 0
    %88 = vmatpush1.bf16.msra.mxu0 0
    %89 = vmatprep.subr.bf16.mxu0 0
    %90 = vmatpush1.bf16.msra.mxu0 0
    %91 = vmatprep.subr.bf16.mxu0 0
    %92 = vmatpush1.bf16.msra.mxu0 0
    %93 = vmatprep.subr.bf16.mxu0 0
    %94 = vmatpush1.bf16.msra.mxu0 0
    %95 = vmatprep.subr.bf16.mxu0 0
    %96 = vmatpush1.bf16.msra.mxu0 0
    %97 = vmatprep.subr.bf16.mxu0 0
    %98 = vmatpush1.bf16.msra.mxu0 0
    %99 = vmatprep.subr.bf16.mxu0 0
    %100 = vmatpush1.bf16.msra.mxu0 0
    %101 = vmatprep.subr.bf16.mxu0 0
    %102 = vmatpush1.bf16.msra.mxu0 0
    %103 = vmatprep.mubr.bf16.mxu0 0
    %104 = vmatmul.mubr.bf16.gmra.mrb[0].mxu0 %v69
    %v105 = vpop.f32.mrb[0].mxu0
    %v106 = vadd.f32 %v53, %v105
    %v107 = vpop.f32.mrb[0].mxu0
    %v108 = vpop.f32.mrb[0].mxu0
    %v109 = vpop.f32.mrb[0].mxu0
    %110 = vdwg.mxu0
    %v111 = vmax.f32 %v106, 0.0
    %v112 = vpack.c.bf16 %v111, %v111
    %v113 = vld [vmem:[%s3] sm:$0xf]
    %v114 = vld [vmem:[%s3 + $0x4] sm:$0xf]
    %v115 = vld [vmem:[%s3 + $0x8] sm:$0xf]
    %v116 = vld [vmem:[%s3 + $0xc] sm:$0xf]
    %v117 = vld [vmem:[%s3 + $0x10] sm:$0xf]
    %v118 = vld [vmem:[%s3 + $0x14] sm:$0xf]
    %v119 = vld [vmem:[%s3 + $0x18] sm:$0xf]
    %v120 = vld [vmem:[%s3 + $0x1c] sm:$0xf]
    %v121 = vld [vmem:[%s4] sm:$0x1]
    %v123 = vlaneseq
    %v124 = vshrl.u32 %v123, 7
    %v125 = vsub.s32 0, %v124
    %v126 = vrot.slane %v121, %v125
    %v136 = vunpack.c.l.b16 %v113
    %v137 = vunpack.c.l.b16 %v114
    %v138 = vunpack.c.l.b16 %v115
    %v139 = vunpack.c.l.b16 %v116
    %v140 = vunpack.c.l.b16 %v117
    %v141 = vunpack.c.l.b16 %v118
    %v142 = vunpack.c.l.b16 %v119
    %v143 = vunpack.c.l.b16 %v120
    %v144 = vpack.c.b16 %v137, %v136
    %v145 = vpack.c.b16 %v139, %v138
    %v146 = vpack.c.b16 %v141, %v140
    %v147 = vpack.c.b16 %v143, %v142
    %vm152 = vcmask 523264
    %v154 = vsel %vm152, %v112, 0
    %156 = vmatprep.subr.bf16.mxu0 0
    %157 = vmatpush1.bf16.msra.mxu0 %v144
    %158 = vmatprep.subr.bf16.mxu0 0
    %159 = vmatpush1.bf16.msra.mxu0 %v145
    %160 = vmatprep.subr.bf16.mxu0 0
    %161 = vmatpush1.bf16.msra.mxu0 %v146
    %162 = vmatprep.subr.bf16.mxu0 0
    %163 = vmatpush1.bf16.msra.mxu0 %v147
    %164 = vmatprep.subr.bf16.mxu0 0
    %165 = vmatpush1.bf16.msra.mxu0 0
    %166 = vmatprep.subr.bf16.mxu0 0
    %167 = vmatpush1.bf16.msra.mxu0 0
    %168 = vmatprep.subr.bf16.mxu0 0
    %169 = vmatpush1.bf16.msra.mxu0 0
    %170 = vmatprep.subr.bf16.mxu0 0
    %171 = vmatpush1.bf16.msra.mxu0 0
    %172 = vmatprep.subr.bf16.mxu0 0
    %173 = vmatpush1.bf16.msra.mxu0 0
    %174 = vmatprep.subr.bf16.mxu0 0
    %175 = vmatpush1.bf16.msra.mxu0 0
    %176 = vmatprep.subr.bf16.mxu0 0
    %177 = vmatpush1.bf16.msra.mxu0 0
    %178 = vmatprep.subr.bf16.mxu0 0
    %179 = vmatpush1.bf16.msra.mxu0 0
    %180 = vmatprep.subr.bf16.mxu0 0
    %181 = vmatpush1.bf16.msra.mxu0 0
    %182 = vmatprep.subr.bf16.mxu0 0
    %183 = vmatpush1.bf16.msra.mxu0 0
    %184 = vmatprep.subr.bf16.mxu0 0
    %185 = vmatpush1.bf16.msra.mxu0 0
    %186 = vmatprep.subr.bf16.mxu0 0
    %187 = vmatpush1.bf16.msra.mxu0 0
    %188 = vmatprep.mubr.bf16.mxu0 0
    %189 = vmatmul.mubr.bf16.gmra.mrb[0].mxu0 %v154
    %v190 = vpop.f32.mrb[0].mxu0
    %v191 = vadd.f32 %v126, %v190
    %v192 = vpop.f32.mrb[0].mxu0
    %v193 = vpop.f32.mrb[0].mxu0
    %v194 = vpop.f32.mrb[0].mxu0
    %195 = vdwg.mxu0
    %v196 = vmax.f32 %v191, 0.0
    %v197 = vpack.c.bf16 %v196, %v196
    %v198 = vld [vmem:[%s5] sm:$0xf]
    %v199 = vld [vmem:[%s5 + $0x4] sm:$0xf]
    %v200 = vld [vmem:[%s5 + $0x8] sm:$0xf]
    %v201 = vld [vmem:[%s5 + $0xc] sm:$0xf]
    %v202 = vld [vmem:[%s5 + $0x10] sm:$0xf]
    %v203 = vld [vmem:[%s5 + $0x14] sm:$0xf]
    %v204 = vld [vmem:[%s5 + $0x18] sm:$0xf]
    %v205 = vld [vmem:[%s5 + $0x1c] sm:$0xf]
    %v206 = vld [vmem:[%s6] sm:$0x1]
    %v208 = vlaneseq
    %v209 = vshrl.u32 %v208, 7
    %v210 = vsub.s32 0, %v209
    %v211 = vrot.slane %v206, %v210
    %v221 = vunpack.c.l.b16 %v198
    %v222 = vunpack.c.l.b16 %v199
    %v223 = vunpack.c.l.b16 %v200
    %v224 = vunpack.c.l.b16 %v201
    %v225 = vunpack.c.l.b16 %v202
    %v226 = vunpack.c.l.b16 %v203
    %v227 = vunpack.c.l.b16 %v204
    %v228 = vunpack.c.l.b16 %v205
    %v229 = vpack.c.b16 %v222, %v221
    %v230 = vpack.c.b16 %v224, %v223
    %v231 = vpack.c.b16 %v226, %v225
    %v232 = vpack.c.b16 %v228, %v227
    %v238 = vsel %vm152, %v197, 0
    %240 = vmatprep.subr.bf16.mxu0 0
    %241 = vmatpush1.bf16.msra.mxu0 %v229
    %242 = vmatprep.subr.bf16.mxu0 0
    %243 = vmatpush1.bf16.msra.mxu0 %v230
    %244 = vmatprep.subr.bf16.mxu0 0
    %245 = vmatpush1.bf16.msra.mxu0 %v231
    %246 = vmatprep.subr.bf16.mxu0 0
    %247 = vmatpush1.bf16.msra.mxu0 %v232
    %248 = vmatprep.subr.bf16.mxu0 0
    %249 = vmatpush1.bf16.msra.mxu0 0
    %250 = vmatprep.subr.bf16.mxu0 0
    %251 = vmatpush1.bf16.msra.mxu0 0
    %252 = vmatprep.subr.bf16.mxu0 0
    %253 = vmatpush1.bf16.msra.mxu0 0
    %254 = vmatprep.subr.bf16.mxu0 0
    %255 = vmatpush1.bf16.msra.mxu0 0
    %256 = vmatprep.subr.bf16.mxu0 0
    %257 = vmatpush1.bf16.msra.mxu0 0
    %258 = vmatprep.subr.bf16.mxu0 0
    %259 = vmatpush1.bf16.msra.mxu0 0
    %260 = vmatprep.subr.bf16.mxu0 0
    %261 = vmatpush1.bf16.msra.mxu0 0
    %262 = vmatprep.subr.bf16.mxu0 0
    %263 = vmatpush1.bf16.msra.mxu0 0
    %264 = vmatprep.subr.bf16.mxu0 0
    %265 = vmatpush1.bf16.msra.mxu0 0
    %266 = vmatprep.subr.bf16.mxu0 0
    %267 = vmatpush1.bf16.msra.mxu0 0
    %268 = vmatprep.subr.bf16.mxu0 0
    %269 = vmatpush1.bf16.msra.mxu0 0
    %270 = vmatprep.subr.bf16.mxu0 0
    %271 = vmatpush1.bf16.msra.mxu0 0
    %272 = vmatprep.mubr.bf16.mxu0 0
    %273 = vmatmul.mubr.bf16.gmra.mrb[0].mxu0 %v238
    %v274 = vpop.f32.mrb[0].mxu0
    %v275 = vadd.f32 %v211, %v274
    %v276 = vpop.f32.mrb[0].mxu0
    %v277 = vpop.f32.mrb[0].mxu0
    %v278 = vpop.f32.mrb[0].mxu0
    %279 = vdwg.mxu0
    %vm280 = vcmask 64512
    %281 = vst.msk [vmem:[#allocation5] sm:$0xff] %vm280, %v275
    // Predicated region
    $region34: #{tpu_custom_call.1} parent=1 // pred_check
      _
    $region35: #{tpu_custom_call.1} parent=1 // pred_check_branch
      %283 = sbr.rel (0) target = $region37
    $region36: #{tpu_custom_call.1} parent=1 // pred_region
      %s285 = ssub.s32 128, 128
      %286 = vsyncadd [#allocation4], %s285
      %s288 = sshll.u32 [#allocation5], 4
      %s289 = int_to_ptr.vmem [resolvable:$true] %s288
      %291 = dma.vmem_to_hbm [thread:$0]  %s289, 128, %s7, [#allocation4]
    $region37: #{tpu_custom_call.1} parent=1 // pred_fallthru
      _
    // Predicated region
    $region38: #{tpu_custom_call.1} parent=1 // pred_check
      _
    $region39: #{tpu_custom_call.1} parent=1 // pred_check_branch
      %293 = sbr.rel (0) target = $region41
    $region40: #{tpu_custom_call.1} parent=1 // pred_region
      %294 = dma.done [#allocation4], 128
    $region41: #{tpu_custom_call.1} parent=1 // pred_fallthru
      _
    %295 = vsyncpa [#allocation3], 1
    %296 = vsyncpa [#allocation4], 1

</llo_original>
